<compile_context>
chip_gen: v5e
topology: v5e:2x2
jax: 0.10.0
libtpu: 0.0.40
codegen_flags: <defaults>
</compile_context>

<pallas_src>
import functools

import jax
import jax.numpy as jnp
from jax.experimental import pallas as pl
from jax.experimental.pallas import tpu as pltpu

IN_DIM, HID_DIM, OUT_DIM = 784, 256, 10
DROP_P = 0.2


def _net_mc_kernel(x_ref, w1_ref, b1_ref, w2_ref, b2_ref, mask_ref, o_ref,
                   *, num_samples, inv_num_samples):
    # ---- sample-independent work: once per batch tile ----------------------
    h = jnp.dot(x_ref[...], w1_ref[...], preferred_element_type=jnp.float32)
    h = jnp.maximum(h + b1_ref[...], 0.0)                            # (tb, 256) f32
    hw2 = jnp.dot(h, w2_ref[...], preferred_element_type=jnp.float32)  # (tb, 10) f32
    b2 = b2_ref[...]                                                 # (1, 10)

    # ---- per-sample epilogue: (tb, 10) row-scale + log_softmax -------------
    def sample_step(s, acc):
        m = mask_ref[s]                      # (tb, 1) pre-scaled row keep mask
        logits = m * hw2 + b2
        z = logits - jnp.max(logits, axis=1, keepdims=True)
        lse = jnp.log(jnp.sum(jnp.exp(z), axis=1, keepdims=True))
        return acc + (z - lse)

    acc = jax.lax.fori_loop(0, num_samples, sample_step,
                            jnp.zeros_like(hw2),
                            unroll=True if num_samples <= 8 else 8)
    o_ref[...] = (acc * inv_num_samples).astype(o_ref.dtype)


def _pick_batch_tile(batch, num_samples):
    # Per-row VMEM bytes (double-buffered where pipelined):
    #   x tile bf16 x2 : 784*2*2 = 3136
    #   mask f32 (trailing dim 1 lane-pads to 128) x2 : 1024 * S
    #   fc1 intermediate f32 : 1024 ; out tile f32 x2 : 80
    per_row = 3136 + 1024 * num_samples + 1024 + 80
    cap = max((24 * 1024 * 1024) // per_row, 8)   # headroom under 32 MiB scoped
    for tb in (4096, 2048, 1024, 512, 256, 128, 64, 32, 16, 8):
        if tb <= cap and batch % tb == 0 and (batch // tb >= 2 or batch < 16):
            return tb                  # >=2 tiles when possible -> v7x megacore
    return batch                       # tiny / odd batch: single full tile


@functools.partial(jax.jit, static_argnames=("num_samples",))
def mc_dropout_predict(x, w1, b1, w2, b2, key, num_samples):
    """Mean of `num_samples` stochastic forward passes. x: [B, 784] f32 -> [B, 10]."""
    batch = x.shape[0]
    tb = _pick_batch_tile(batch, num_samples)

    # Per-sample, per-row keep mask, pre-scaled by 1/(1-p) (Dropout1d rows).
    keep = jax.random.bernoulli(key, 1.0 - DROP_P, (num_samples, batch, 1))
    mask = keep.astype(jnp.float32) * (1.0 / (1.0 - DROP_P))

    # bf16 inputs for the dominant matmul; accumulation / epilogue stay f32.
    x_bf = x.astype(jnp.bfloat16)
    w1_bf = w1.astype(jnp.bfloat16)

    kernel = functools.partial(_net_mc_kernel, num_samples=num_samples,
                               inv_num_samples=1.0 / num_samples)

    cost = pl.CostEstimate(
        flops=2 * batch * (IN_DIM * HID_DIM + HID_DIM * OUT_DIM)
              + 8 * num_samples * batch * OUT_DIM,
        transcendentals=num_samples * batch * (OUT_DIM + 1),
        bytes_accessed=batch * IN_DIM * 2 + IN_DIM * HID_DIM * 2
                       + (HID_DIM + HID_DIM * OUT_DIM + OUT_DIM) * 4
                       + num_samples * batch * 4 + batch * OUT_DIM * 4,
    )

    return pl.pallas_call(
        kernel,
        out_shape=jax.ShapeDtypeStruct((batch, OUT_DIM), jnp.float32),
        grid=(batch // tb,),
        in_specs=[
            pl.BlockSpec((tb, IN_DIM), lambda i: (i, 0)),              # x tile
            pl.BlockSpec((IN_DIM, HID_DIM), lambda i: (0, 0)),         # w1 (resident)
            pl.BlockSpec((1, HID_DIM), lambda i: (0, 0)),              # b1 (resident)
            pl.BlockSpec((HID_DIM, OUT_DIM), lambda i: (0, 0)),        # w2 (resident)
            pl.BlockSpec((1, OUT_DIM), lambda i: (0, 0)),              # b2 (resident)
            pl.BlockSpec((num_samples, tb, 1), lambda i: (0, i, 0)),   # masks (resident per tile)
        ],
        out_specs=pl.BlockSpec((tb, OUT_DIM), lambda i: (i, 0)),
        compiler_params=pltpu.CompilerParams(
            dimension_semantics=("parallel",),
            vmem_limit_bytes=32 * 1024 * 1024),
        cost_estimate=cost,
    )(x_bf, w1_bf, b1, w2, b2, mask)


def net_mc_dropout_forward(x, w1, b1, w2, b2, key):
    """Single stochastic forward pass (the module's `forward`)."""
    return mc_dropout_predict(x, w1, b1, w2, b2, key, num_samples=1)


def _reference(x, w1, b1, w2, b2, mask):
    """Pure-JAX reference: mean over samples of log_softmax(fc2(drop(relu(fc1(x)))))."""
    h = jnp.dot(x.astype(jnp.bfloat16), w1.astype(jnp.bfloat16),
                preferred_element_type=jnp.float32)
    h = jnp.maximum(h + b1, 0.0)                       # (B, 256)
    hd = h[None, :, :] * mask                          # (S, B, 256)
    logits = jnp.einsum("sbh,ho->sbo", hd, w2) + b2
    return jnp.mean(jax.nn.log_softmax(logits, axis=-1), axis=0)


def init_params(key):
    """PyTorch-style nn.Linear init: U(-1/sqrt(fan_in), 1/sqrt(fan_in))."""
    k1, k2, k3, k4 = jax.random.split(key, 4)
    b1_bound = 1.0 / jnp.sqrt(IN_DIM)
    b2_bound = 1.0 / jnp.sqrt(HID_DIM)
    w1 = jax.random.uniform(k1, (IN_DIM, HID_DIM), jnp.float32, -b1_bound, b1_bound)
    b1 = jax.random.uniform(k2, (1, HID_DIM), jnp.float32, -b1_bound, b1_bound)
    w2 = jax.random.uniform(k3, (HID_DIM, OUT_DIM), jnp.float32, -b2_bound, b2_bound)
    b2 = jax.random.uniform(k4, (1, OUT_DIM), jnp.float32, -b2_bound, b2_bound)
    return w1, b1, w2, b2


if __name__ == "__main__":
    key = jax.random.PRNGKey(0)
    pkey, xkey, dkey1, dkey2 = jax.random.split(key, 4)
    w1, b1, w2, b2 = init_params(pkey)

    B = 8
    NUM_SAMPLES = 4
    x = jax.random.normal(xkey, (B, IN_DIM), dtype=jnp.float32)

    # single stochastic forward pass (the module's forward)
    log_probs = net_mc_dropout_forward(x, w1, b1, w2, b2, dkey1)
    jax.block_until_ready(log_probs)
    assert log_probs.shape == (B, OUT_DIM)

    # MC-dropout prediction: mean of NUM_SAMPLES stochastic passes, one launch
    mc_mean = mc_dropout_predict(x, w1, b1, w2, b2, dkey2, num_samples=NUM_SAMPLES)
    jax.block_until_ready(mc_mean)
    assert mc_mean.shape == (B, OUT_DIM)

    # numerical check vs pure-JAX reference using the same dropout masks
    keep = jax.random.bernoulli(dkey2, 1.0 - DROP_P, (NUM_SAMPLES, B, 1))
    mask = keep.astype(jnp.float32) * (1.0 / (1.0 - DROP_P))
    ref = _reference(x, w1, b1, w2, b2, mask)
    assert jnp.allclose(mc_mean, ref, atol=5e-3, rtol=5e-3), (
        f"max abs err {jnp.max(jnp.abs(mc_mean - ref))}")

    print("KERNEL_OK")
</pallas_src>

<mosaic_0001>
module attributes {stable_mosaic.version = 11 : i64} {
  func.func @_net_mc_kernel(%arg0: i32, %arg1: memref<8x784xbf16, #tpu.memory_space<vmem>>, %arg2: memref<784x256xbf16, #tpu.memory_space<vmem>>, %arg3: memref<1x256xf32, #tpu.memory_space<vmem>>, %arg4: memref<256x10xf32, #tpu.memory_space<vmem>>, %arg5: memref<1x10xf32, #tpu.memory_space<vmem>>, %arg6: memref<1x8x1xf32, #tpu.memory_space<vmem>>, %arg7: memref<8x10xf32, #tpu.memory_space<vmem>>) attributes {dimension_semantics = [#tpu.dimension_semantics<parallel>], iteration_bounds = array<i64: 1>, scalar_prefetch = 0 : i64, scratch_operands = 0 : i64, tpu.core_type = #tpu.core_type<tc>, window_params = [{transform_indices = @transform_0, window_bounds = array<i64: 8, 784>}, {pipeline_mode = #tpu.pipeline_mode<synchronous>, transform_indices = @transform_1, window_bounds = array<i64: 784, 256>}, {pipeline_mode = #tpu.pipeline_mode<synchronous>, transform_indices = @transform_2, window_bounds = array<i64: 1, 256>}, {pipeline_mode = #tpu.pipeline_mode<synchronous>, transform_indices = @transform_3, window_bounds = array<i64: 256, 10>}, {pipeline_mode = #tpu.pipeline_mode<synchronous>, transform_indices = @transform_4, window_bounds = array<i64: 1, 10>}, {transform_indices = @transform_5, window_bounds = array<i64: 1, 8, 1>}, {transform_indices = @transform_6, window_bounds = array<i64: 8, 10>}]} {
    %c0 = arith.constant 0 : index
    %c0_0 = arith.constant 0 : index
    %0 = vector.load %arg1[%c0, %c0_0] : memref<8x784xbf16, #tpu.memory_space<vmem>>, vector<8x784xbf16>
    %c0_1 = arith.constant 0 : index
    %c0_2 = arith.constant 0 : index
    %1 = vector.load %arg2[%c0_1, %c0_2] : memref<784x256xbf16, #tpu.memory_space<vmem>>, vector<784x256xbf16>
    %cst = arith.constant dense<0.000000e+00> : vector<8x256xf32>
    %2 = tpu.matmul %0, %1, %cst {dimension_numbers = #tpu.dot_dimension_numbers<[1], [0], [0], [1], [0, 0, 1, 1], [], []>} : vector<8x784xbf16>, vector<784x256xbf16>, vector<8x256xf32> -> vector<8x256xf32>
    %c0_3 = arith.constant 0 : index
    %c0_4 = arith.constant 0 : index
    %3 = vector.load %arg3[%c0_3, %c0_4] : memref<1x256xf32, #tpu.memory_space<vmem>>, vector<1x256xf32>
    %4 = vector.broadcast %3 : vector<1x256xf32> to vector<8x256xf32>
    %5 = arith.addf %2, %4 : vector<8x256xf32>
    %cst_5 = arith.constant 0.000000e+00 : f32
    %6 = vector.broadcast %cst_5 : f32 to vector<8x256xf32>
    %7 = arith.maximumf %5, %6 : vector<8x256xf32>
    %c0_6 = arith.constant 0 : index
    %c0_7 = arith.constant 0 : index
    %8 = vector.load %arg4[%c0_6, %c0_7] : memref<256x10xf32, #tpu.memory_space<vmem>>, vector<256x10xf32>
    %cst_8 = arith.constant dense<0.000000e+00> : vector<8x10xf32>
    %9 = tpu.matmul %7, %8, %cst_8 {dimension_numbers = #tpu.dot_dimension_numbers<[1], [0], [0], [1], [0, 0, 1, 1], [], []>} : vector<8x256xf32>, vector<256x10xf32>, vector<8x10xf32> -> vector<8x10xf32>
    %c0_9 = arith.constant 0 : index
    %c0_10 = arith.constant 0 : index
    %10 = vector.load %arg5[%c0_9, %c0_10] : memref<1x10xf32, #tpu.memory_space<vmem>>, vector<1x10xf32>
    %cst_11 = arith.constant 0.000000e+00 : f32
    %11 = vector.broadcast %cst_11 : f32 to vector<8x10xf32>
    %c0_i32 = arith.constant 0 : i32
    %12 = arith.index_cast %c0_i32 : i32 to index
    %c0_12 = arith.constant 0 : index
    %c0_13 = arith.constant 0 : index
    %13 = vector.load %arg6[%12, %c0_12, %c0_13] : memref<1x8x1xf32, #tpu.memory_space<vmem>>, vector<1x8x1xf32>
    %14 = vector.shape_cast %13 : vector<1x8x1xf32> to vector<8x1xf32>
    %15 = vector.broadcast %14 : vector<8x1xf32> to vector<8x10xf32>
    %16 = arith.mulf %15, %9 : vector<8x10xf32>
    %17 = vector.broadcast %10 : vector<1x10xf32> to vector<8x10xf32>
    %18 = arith.addf %16, %17 : vector<8x10xf32>
    %cst_14 = arith.constant dense<0xFF800000> : vector<8xf32>
    %19 = vector.multi_reduction <maximumf>, %18, %cst_14 [1] : vector<8x10xf32> to vector<8xf32>
    %20 = vector.shape_cast %19 : vector<8xf32> to vector<8x1xf32>
    %21 = vector.broadcast %20 : vector<8x1xf32> to vector<8x10xf32>
    %22 = arith.subf %18, %21 : vector<8x10xf32>
    %23 = math.exp %22 : vector<8x10xf32>
    %cst_15 = arith.constant dense<0.000000e+00> : vector<8xf32>
    %24 = vector.multi_reduction <add>, %23, %cst_15 [1] : vector<8x10xf32> to vector<8xf32>
    %25 = vector.shape_cast %24 : vector<8xf32> to vector<8x1xf32>
    %26 = math.log %25 : vector<8x1xf32>
    %27 = vector.broadcast %26 : vector<8x1xf32> to vector<8x10xf32>
    %28 = arith.subf %22, %27 : vector<8x10xf32>
    %29 = arith.addf %11, %28 : vector<8x10xf32>
    %c1_i32 = arith.constant 1 : i32
    %cst_16 = arith.constant 1.000000e+00 : f32
    %30 = vector.broadcast %cst_16 : f32 to vector<8x10xf32>
    %31 = arith.mulf %29, %30 : vector<8x10xf32>
    %c0_17 = arith.constant 0 : index
    %c0_18 = arith.constant 0 : index
    %32 = vector.load %arg7[%c0_17, %c0_18] : memref<8x10xf32, #tpu.memory_space<vmem>>, vector<8x10xf32>
    tpu.vector_store %arg7[%c0_17, %c0_18], %31 {strides = array<i32>} : memref<8x10xf32, #tpu.memory_space<vmem>>, vector<8x10xf32>,
    return
  }
  func.func @transform_0(%arg0: i32) -> (i32, i32) {
    %c0_i32 = arith.constant 0 : i32
    %c0_i32_0 = arith.constant 0 : i32
    return %arg0, %c0_i32 : i32, i32
  }
  func.func @transform_1(%arg0: i32) -> (i32, i32) {
    %c0_i32 = arith.constant 0 : i32
    %c0_i32_0 = arith.constant 0 : i32
    %c0_i32_1 = arith.constant 0 : i32
    return %c0_i32, %c0_i32_0 : i32, i32
  }
  func.func @transform_2(%arg0: i32) -> (i32, i32) {
    %c0_i32 = arith.constant 0 : i32
    %c0_i32_0 = arith.constant 0 : i32
    %c0_i32_1 = arith.constant 0 : i32
    return %c0_i32, %c0_i32_0 : i32, i32
  }
  func.func @transform_3(%arg0: i32) -> (i32, i32) {
    %c0_i32 = arith.constant 0 : i32
    %c0_i32_0 = arith.constant 0 : i32
    %c0_i32_1 = arith.constant 0 : i32
    return %c0_i32, %c0_i32_0 : i32, i32
  }
  func.func @transform_4(%arg0: i32) -> (i32, i32) {
    %c0_i32 = arith.constant 0 : i32
    %c0_i32_0 = arith.constant 0 : i32
    %c0_i32_1 = arith.constant 0 : i32
    return %c0_i32, %c0_i32_0 : i32, i32
  }
  func.func @transform_5(%arg0: i32) -> (i32, i32, i32) {
    %c0_i32 = arith.constant 0 : i32
    %c0_i32_0 = arith.constant 0 : i32
    %c0_i32_1 = arith.constant 0 : i32
    return %c0_i32, %arg0, %c0_i32_0 : i32, i32, i32
  }
  func.func @transform_6(%arg0: i32) -> (i32, i32) {
    %c0_i32 = arith.constant 0 : i32
    %c0_i32_0 = arith.constant 0 : i32
    return %arg0, %c0_i32 : i32, i32
  }
}

</mosaic_0001>

<llo_original>
// kernel: mc_dropout_predict.1
$region0: #{mc_dropout_predict.1}
  #allocation0 [shape = 'u32[]', space=smem, size = 0x4, offset = 0x4, fixed_abs, tag = 'smem constant byte address 0x4 - core index']
  #allocation1 [shape = 'u32[72,128]{1,0:T(1,128)}', space=vmem, size = 0x9000, scoped, tag = 'internal scratch']
  %s0 = inlined_call_operand.vmem [shape: bf16[8,784], index: 0, kind: input, shape index: {}]
  %s1 = inlined_call_operand.vmem [shape: bf16[784,256], index: 1, kind: input, shape index: {}]
  %s2 = inlined_call_operand.vmem [shape: f32[1,256], index: 2, kind: input, shape index: {}]
  %s3 = inlined_call_operand.vmem [shape: f32[256,10], index: 3, kind: input, shape index: {}]
  %s4 = inlined_call_operand.vmem [shape: f32[1,10], index: 4, kind: input, shape index: {}]
  %s5 = inlined_call_operand.vmem [shape: f32[1,8,1], index: 5, kind: input, shape index: {}]
  %s6 = inlined_call_operand.hbm [shape: f32[8,10], index: 6, kind: output, shape index: {}]
  %s7 = sld [smem:[#allocation0]]
  $region34: #{mc_dropout_predict.1} parent=0
    _
  %s9 = ssub.s32 1, %s7
  %s10 = scalar_select 0, %s9, %s7
  $region1: #{mc_dropout_predict.1} parent=0
    #allocation2 [shape = 'u8[4096]{0}', space=vmem, size = 0x1000, scoped, tag = 'output window, operand 0, single buffered']
    #allocation3 [shape = 's32[1]{0}', space=sflag, size = 0x4, scoped, tag = 'scoped memory for mc_dropout_predict.1']
    %11 = vsyncpa [#allocation3], 0
    // Predicated region
    $region2: #{mc_dropout_predict.1} parent=1 // pred_check
      _
    $region3: #{mc_dropout_predict.1} parent=1 // pred_check_branch
      %13 = sbr.rel (0) target = $region5
    $region4: #{mc_dropout_predict.1} parent=1 // pred_region
      _
    $region5: #{mc_dropout_predict.1} parent=1 // pred_fallthru
      _
    // Predicated region
    $region6: #{mc_dropout_predict.1} parent=1 // pred_check
      _
    $region7: #{mc_dropout_predict.1} parent=1 // pred_check_branch
      %15 = sbr.rel (0) target = $region9
    $region8: #{mc_dropout_predict.1} parent=1 // pred_region
      _
    $region9: #{mc_dropout_predict.1} parent=1 // pred_fallthru
      _
    // Predicated region
    $region10: #{mc_dropout_predict.1} parent=1 // pred_check
      _
    $region11: #{mc_dropout_predict.1} parent=1 // pred_check_branch
      %17 = sbr.rel (0) target = $region13
    $region12: #{mc_dropout_predict.1} parent=1 // pred_region
      _
    $region13: #{mc_dropout_predict.1} parent=1 // pred_fallthru
      _
    // Predicated region
    $region14: #{mc_dropout_predict.1} parent=1 // pred_check
      _
    $region15: #{mc_dropout_predict.1} parent=1 // pred_check_branch
      %19 = sbr.rel (0) target = $region17
    $region16: #{mc_dropout_predict.1} parent=1 // pred_region
      _
    $region17: #{mc_dropout_predict.1} parent=1 // pred_fallthru
      _
    // Predicated region
    $region18: #{mc_dropout_predict.1} parent=1 // pred_check
      _
    $region19: #{mc_dropout_predict.1} parent=1 // pred_check_branch
      %21 = sbr.rel (0) target = $region21
    $region20: #{mc_dropout_predict.1} parent=1 // pred_region
      _
    $region21: #{mc_dropout_predict.1} parent=1 // pred_fallthru
      _
    // Predicated region
    $region22: #{mc_dropout_predict.1} parent=1 // pred_check
      _
    $region23: #{mc_dropout_predict.1} parent=1 // pred_check_branch
      %23 = sbr.rel (0) target = $region25
    $region24: #{mc_dropout_predict.1} parent=1 // pred_region
      _
    $region25: #{mc_dropout_predict.1} parent=1 // pred_fallthru
      _
    %v25 = vld [vmem:[%s0] sm:$0xff]
    %v26 = vld [vmem:[%s0 + $0x8] sm:$0xff]
    %v27 = vld [vmem:[%s0 + $0x10] sm:$0xff]
    %v28 = vld [vmem:[%s0 + $0x18] sm:$0xf]
    %v29 = vld [vmem:[%s1] sm:$0xff]
    %v30 = vld [vmem:[%s1 + $0x8] sm:$0xff]
    %v31 = vld [vmem:[%s1 + $0x10] sm:$0xff]
    %v32 = vld [vmem:[%s1 + $0x18] sm:$0xff]
    %v33 = vld [vmem:[%s1 + $0x20] sm:$0xff]
    %v34 = vld [vmem:[%s1 + $0x28] sm:$0xff]
    %v35 = vld [vmem:[%s1 + $0x30] sm:$0xff]
    %v36 = vld [vmem:[%s1 + $0x38] sm:$0xff]
    %v37 = vld [vmem:[%s1 + $0x40] sm:$0xff]
    %v38 = vld [vmem:[%s1 + $0x48] sm:$0xff]
    %v39 = vld [vmem:[%s1 + $0x50] sm:$0xff]
    %v40 = vld [vmem:[%s1 + $0x58] sm:$0xff]
    %v41 = vld [vmem:[%s1 + $0x60] sm:$0xff]
    %v42 = vld [vmem:[%s1 + $0x68] sm:$0xff]
    %v43 = vld [vmem:[%s1 + $0x70] sm:$0xff]
    %v44 = vld [vmem:[%s1 + $0x78] sm:$0xff]
    %v45 = vld [vmem:[%s1 + $0x80] sm:$0xff]
    %v46 = vld [vmem:[%s1 + $0x88] sm:$0xff]
    %v47 = vld [vmem:[%s1 + $0x90] sm:$0xff]
    %v48 = vld [vmem:[%s1 + $0x98] sm:$0xff]
    %v49 = vld [vmem:[%s1 + $0xa0] sm:$0xff]
    %v50 = vld [vmem:[%s1 + $0xa8] sm:$0xff]
    %v51 = vld [vmem:[%s1 + $0xb0] sm:$0xff]
    %v52 = vld [vmem:[%s1 + $0xb8] sm:$0xff]
    %v53 = vld [vmem:[%s1 + $0xc0] sm:$0xff]
    %v54 = vld [vmem:[%s1 + $0xc8] sm:$0xff]
    %v55 = vld [vmem:[%s1 + $0xd0] sm:$0xff]
    %v56 = vld [vmem:[%s1 + $0xd8] sm:$0xff]
    %v57 = vld [vmem:[%s1 + $0xe0] sm:$0xff]
    %v58 = vld [vmem:[%s1 + $0xe8] sm:$0xff]
    %v59 = vld [vmem:[%s1 + $0xf0] sm:$0xff]
    %v60 = vld [vmem:[%s1 + $0xf8] sm:$0xff]
    %v61 = vld [vmem:[%s1 + $0x100] sm:$0xff]
    %v62 = vld [vmem:[%s1 + $0x108] sm:$0xff]
    %v63 = vld [vmem:[%s1 + $0x110] sm:$0xff]
    %v64 = vld [vmem:[%s1 + $0x118] sm:$0xff]
    %v65 = vld [vmem:[%s1 + $0x120] sm:$0xff]
    %v66 = vld [vmem:[%s1 + $0x128] sm:$0xff]
    %v67 = vld [vmem:[%s1 + $0x130] sm:$0xff]
    %v68 = vld [vmem:[%s1 + $0x138] sm:$0xff]
    %v69 = vld [vmem:[%s1 + $0x140] sm:$0xff]
    %v70 = vld [vmem:[%s1 + $0x148] sm:$0xff]
    %v71 = vld [vmem:[%s1 + $0x150] sm:$0xff]
    %v72 = vld [vmem:[%s1 + $0x158] sm:$0xff]
    %v73 = vld [vmem:[%s1 + $0x160] sm:$0xff]
    %v74 = vld [vmem:[%s1 + $0x168] sm:$0xff]
    %v75 = vld [vmem:[%s1 + $0x170] sm:$0xff]
    %v76 = vld [vmem:[%s1 + $0x178] sm:$0xff]
    %v77 = vld [vmem:[%s1 + $0x180] sm:$0xff]
    %v78 = vld [vmem:[%s1 + $0x188] sm:$0xff]
    %v79 = vld [vmem:[%s1 + $0x190] sm:$0xff]
    %v80 = vld [vmem:[%s1 + $0x198] sm:$0xff]
    %v81 = vld [vmem:[%s1 + $0x1a0] sm:$0xff]
    %v82 = vld [vmem:[%s1 + $0x1a8] sm:$0xff]
    %v83 = vld [vmem:[%s1 + $0x1b0] sm:$0xff]
    %v84 = vld [vmem:[%s1 + $0x1b8] sm:$0xff]
    %v85 = vld [vmem:[%s1 + $0x1c0] sm:$0xff]
    %v86 = vld [vmem:[%s1 + $0x1c8] sm:$0xff]
    %v87 = vld [vmem:[%s1 + $0x1d0] sm:$0xff]
    %v88 = vld [vmem:[%s1 + $0x1d8] sm:$0xff]
    %v89 = vld [vmem:[%s1 + $0x1e0] sm:$0xff]
    %v90 = vld [vmem:[%s1 + $0x1e8] sm:$0xff]
    %v91 = vld [vmem:[%s1 + $0x1f0] sm:$0xff]
    %v92 = vld [vmem:[%s1 + $0x1f8] sm:$0xff]
    %v93 = vld [vmem:[%s1 + $0x200] sm:$0xff]
    %v94 = vld [vmem:[%s1 + $0x208] sm:$0xff]
    %v95 = vld [vmem:[%s1 + $0x210] sm:$0xff]
    %v96 = vld [vmem:[%s1 + $0x218] sm:$0xff]
    %v97 = vld [vmem:[%s1 + $0x220] sm:$0xff]
    %v98 = vld [vmem:[%s1 + $0x228] sm:$0xff]
    %v99 = vld [vmem:[%s1 + $0x230] sm:$0xff]
    %v100 = vld [vmem:[%s1 + $0x238] sm:$0xff]
    %v101 = vld [vmem:[%s1 + $0x240] sm:$0xff]
    %v102 = vld [vmem:[%s1 + $0x248] sm:$0xff]
    %v103 = vld [vmem:[%s1 + $0x250] sm:$0xff]
    %v104 = vld [vmem:[%s1 + $0x258] sm:$0xff]
    %v105 = vld [vmem:[%s1 + $0x260] sm:$0xff]
    %v106 = vld [vmem:[%s1 + $0x268] sm:$0xff]
    %v107 = vld [vmem:[%s1 + $0x270] sm:$0xff]
    %v108 = vld [vmem:[%s1 + $0x278] sm:$0xff]
    %v109 = vld [vmem:[%s1 + $0x280] sm:$0xff]
    %v110 = vld [vmem:[%s1 + $0x288] sm:$0xff]
    %v111 = vld [vmem:[%s1 + $0x290] sm:$0xff]
    %v112 = vld [vmem:[%s1 + $0x298] sm:$0xff]
    %v113 = vld [vmem:[%s1 + $0x2a0] sm:$0xff]
    %v114 = vld [vmem:[%s1 + $0x2a8] sm:$0xff]
    %v115 = vld [vmem:[%s1 + $0x2b0] sm:$0xff]
    %v116 = vld [vmem:[%s1 + $0x2b8] sm:$0xff]
    %v117 = vld [vmem:[%s1 + $0x2c0] sm:$0xff]
    %v118 = vld [vmem:[%s1 + $0x2c8] sm:$0xff]
    %v119 = vld [vmem:[%s1 + $0x2d0] sm:$0xff]
    %v120 = vld [vmem:[%s1 + $0x2d8] sm:$0xff]
    %v121 = vld [vmem:[%s1 + $0x2e0] sm:$0xff]
    %v122 = vld [vmem:[%s1 + $0x2e8] sm:$0xff]
    %v123 = vld [vmem:[%s1 + $0x2f0] sm:$0xff]
    %v124 = vld [vmem:[%s1 + $0x2f8] sm:$0xff]
    %v125 = vld [vmem:[%s1 + $0x300] sm:$0xff]
    %v126 = vld [vmem:[%s1 + $0x308] sm:$0xff]
    %v127 = vld [vmem:[%s2] sm:$0x3]
    %v129 = vperm.slane %v127, 0
    %v130 = vperm.slane %v127, 1
    %v137 = vunpack.c.l.b16 %v25
    %v138 = vunpack.c.h.b16 %v25
    %v139 = vunpack.c.l.b16 %v26
    %v140 = vunpack.c.h.b16 %v26
    %v141 = vunpack.c.l.b16 %v27
    %v142 = vunpack.c.h.b16 %v27
    %v143 = vunpack.c.l.b16 %v28
    %v144 = vpack.c.b16 %v137, %v137
    %v145 = vpack.c.b16 %v138, %v138
    %v146 = vpack.c.b16 %v139, %v139
    %v147 = vpack.c.b16 %v140, %v140
    %v148 = vpack.c.b16 %v141, %v141
    %v149 = vpack.c.b16 %v142, %v142
    %v150 = vpack.c.b16 %v143, %v143
    %v255 = vunpack.c.l.b16 %v29
    %v256 = vunpack.c.h.b16 %v29
    %v257 = vunpack.c.l.b16 %v30
    %v258 = vunpack.c.h.b16 %v30
    %v259 = vunpack.c.l.b16 %v31
    %v260 = vunpack.c.h.b16 %v31
    %v261 = vunpack.c.l.b16 %v32
    %v262 = vunpack.c.h.b16 %v32
    %v263 = vunpack.c.l.b16 %v33
    %v264 = vunpack.c.h.b16 %v33
    %v265 = vunpack.c.l.b16 %v34
    %v266 = vunpack.c.h.b16 %v34
    %v267 = vunpack.c.l.b16 %v35
    %v268 = vunpack.c.h.b16 %v35
    %v269 = vunpack.c.l.b16 %v36
    %v270 = vunpack.c.h.b16 %v36
    %v271 = vunpack.c.l.b16 %v37
    %v272 = vunpack.c.h.b16 %v37
    %v273 = vunpack.c.l.b16 %v38
    %v274 = vunpack.c.h.b16 %v38
    %v275 = vunpack.c.l.b16 %v39
    %v276 = vunpack.c.h.b16 %v39
    %v277 = vunpack.c.l.b16 %v40
    %v278 = vunpack.c.h.b16 %v40
    %v279 = vunpack.c.l.b16 %v41
    %v280 = vunpack.c.h.b16 %v41
    %v281 = vunpack.c.l.b16 %v42
    %v282 = vunpack.c.h.b16 %v42
    %v283 = vunpack.c.l.b16 %v43
    %v284 = vunpack.c.h.b16 %v43
    %v285 = vunpack.c.l.b16 %v44
    %v286 = vunpack.c.h.b16 %v44
    %v287 = vunpack.c.l.b16 %v45
    %v288 = vunpack.c.h.b16 %v45
    %v289 = vunpack.c.l.b16 %v46
    %v290 = vunpack.c.h.b16 %v46
    %v291 = vunpack.c.l.b16 %v47
    %v292 = vunpack.c.h.b16 %v47
    %v293 = vunpack.c.l.b16 %v48
    %v294 = vunpack.c.h.b16 %v48
    %v295 = vunpack.c.l.b16 %v49
    %v296 = vunpack.c.h.b16 %v49
    %v297 = vunpack.c.l.b16 %v50
    %v298 = vunpack.c.h.b16 %v50
    %v299 = vunpack.c.l.b16 %v51
    %v300 = vunpack.c.h.b16 %v51
    %v301 = vunpack.c.l.b16 %v52
    %v302 = vunpack.c.h.b16 %v52
    %v303 = vunpack.c.l.b16 %v53
    %v304 = vunpack.c.h.b16 %v53
    %v305 = vunpack.c.l.b16 %v54
    %v306 = vunpack.c.h.b16 %v54
    %v307 = vunpack.c.l.b16 %v55
    %v308 = vunpack.c.h.b16 %v55
    %v309 = vunpack.c.l.b16 %v56
    %v310 = vunpack.c.h.b16 %v56
    %v311 = vunpack.c.l.b16 %v57
    %v312 = vunpack.c.h.b16 %v57
    %v313 = vunpack.c.l.b16 %v58
    %v314 = vunpack.c.h.b16 %v58
    %v315 = vunpack.c.l.b16 %v59
    %v316 = vunpack.c.h.b16 %v59
    %v317 = vunpack.c.l.b16 %v60
    %v318 = vunpack.c.h.b16 %v60
    %v319 = vunpack.c.l.b16 %v61
    %v320 = vunpack.c.h.b16 %v61
    %v321 = vunpack.c.l.b16 %v62
    %v322 = vunpack.c.h.b16 %v62
    %v323 = vunpack.c.l.b16 %v63
    %v324 = vunpack.c.h.b16 %v63
    %v325 = vunpack.c.l.b16 %v64
    %v326 = vunpack.c.h.b16 %v64
    %v327 = vunpack.c.l.b16 %v65
    %v328 = vunpack.c.h.b16 %v65
    %v329 = vunpack.c.l.b16 %v66
    %v330 = vunpack.c.h.b16 %v66
    %v331 = vunpack.c.l.b16 %v67
    %v332 = vunpack.c.h.b16 %v67
    %v333 = vunpack.c.l.b16 %v68
    %v334 = vunpack.c.h.b16 %v68
    %v335 = vunpack.c.l.b16 %v69
    %v336 = vunpack.c.h.b16 %v69
    %v337 = vunpack.c.l.b16 %v70
    %v338 = vunpack.c.h.b16 %v70
    %v339 = vunpack.c.l.b16 %v71
    %v340 = vunpack.c.h.b16 %v71
    %v341 = vunpack.c.l.b16 %v72
    %v342 = vunpack.c.h.b16 %v72
    %v343 = vunpack.c.l.b16 %v73
    %v344 = vunpack.c.h.b16 %v73
    %v345 = vunpack.c.l.b16 %v74
    %v346 = vunpack.c.h.b16 %v74
    %v347 = vunpack.c.l.b16 %v75
    %v348 = vunpack.c.h.b16 %v75
    %v349 = vunpack.c.l.b16 %v76
    %v350 = vunpack.c.h.b16 %v76
    %v351 = vunpack.c.l.b16 %v77
    %v352 = vunpack.c.h.b16 %v77
    %v353 = vunpack.c.l.b16 %v78
    %v354 = vunpack.c.h.b16 %v78
    %v355 = vunpack.c.l.b16 %v79
    %v356 = vunpack.c.h.b16 %v79
    %v357 = vunpack.c.l.b16 %v80
    %v358 = vunpack.c.h.b16 %v80
    %v359 = vunpack.c.l.b16 %v81
    %v360 = vunpack.c.h.b16 %v81
    %v361 = vunpack.c.l.b16 %v82
    %v362 = vunpack.c.h.b16 %v82
    %v363 = vunpack.c.l.b16 %v83
    %v364 = vunpack.c.h.b16 %v83
    %v365 = vunpack.c.l.b16 %v84
    %v366 = vunpack.c.h.b16 %v84
    %v367 = vunpack.c.l.b16 %v85
    %v368 = vunpack.c.h.b16 %v85
    %v369 = vunpack.c.l.b16 %v86
    %v370 = vunpack.c.h.b16 %v86
    %v371 = vunpack.c.l.b16 %v87
    %v372 = vunpack.c.h.b16 %v87
    %v373 = vunpack.c.l.b16 %v88
    %v374 = vunpack.c.h.b16 %v88
    %v375 = vunpack.c.l.b16 %v89
    %v376 = vunpack.c.h.b16 %v89
    %v377 = vunpack.c.l.b16 %v90
    %v378 = vunpack.c.h.b16 %v90
    %v379 = vunpack.c.l.b16 %v91
    %v380 = vunpack.c.h.b16 %v91
    %v381 = vunpack.c.l.b16 %v92
    %v382 = vunpack.c.h.b16 %v92
    %v383 = vunpack.c.l.b16 %v93
    %v384 = vunpack.c.h.b16 %v93
    %v385 = vunpack.c.l.b16 %v94
    %v386 = vunpack.c.h.b16 %v94
    %v387 = vunpack.c.l.b16 %v95
    %v388 = vunpack.c.h.b16 %v95
    %v389 = vunpack.c.l.b16 %v96
    %v390 = vunpack.c.h.b16 %v96
    %v391 = vunpack.c.l.b16 %v97
    %v392 = vunpack.c.h.b16 %v97
    %v393 = vunpack.c.l.b16 %v98
    %v394 = vunpack.c.h.b16 %v98
    %v395 = vunpack.c.l.b16 %v99
    %v396 = vunpack.c.h.b16 %v99
    %v397 = vunpack.c.l.b16 %v100
    %v398 = vunpack.c.h.b16 %v100
    %v399 = vunpack.c.l.b16 %v101
    %v400 = vunpack.c.h.b16 %v101
    %v401 = vunpack.c.l.b16 %v102
    %v402 = vunpack.c.h.b16 %v102
    %v403 = vunpack.c.l.b16 %v103
    %v404 = vunpack.c.h.b16 %v103
    %v405 = vunpack.c.l.b16 %v104
    %v406 = vunpack.c.h.b16 %v104
    %v407 = vunpack.c.l.b16 %v105
    %v408 = vunpack.c.h.b16 %v105
    %v409 = vunpack.c.l.b16 %v106
    %v410 = vunpack.c.h.b16 %v106
    %v411 = vunpack.c.l.b16 %v107
    %v412 = vunpack.c.h.b16 %v107
    %v413 = vunpack.c.l.b16 %v108
    %v414 = vunpack.c.h.b16 %v108
    %v415 = vunpack.c.l.b16 %v109
    %v416 = vunpack.c.h.b16 %v109
    %v417 = vunpack.c.l.b16 %v110
    %v418 = vunpack.c.h.b16 %v110
    %v419 = vunpack.c.l.b16 %v111
    %v420 = vunpack.c.h.b16 %v111
    %v421 = vunpack.c.l.b16 %v112
    %v422 = vunpack.c.h.b16 %v112
    %v423 = vunpack.c.l.b16 %v113
    %v424 = vunpack.c.h.b16 %v113
    %v425 = vunpack.c.l.b16 %v114
    %v426 = vunpack.c.h.b16 %v114
    %v427 = vunpack.c.l.b16 %v115
    %v428 = vunpack.c.h.b16 %v115
    %v429 = vunpack.c.l.b16 %v116
    %v430 = vunpack.c.h.b16 %v116
    %v431 = vunpack.c.l.b16 %v117
    %v432 = vunpack.c.h.b16 %v117
    %v433 = vunpack.c.l.b16 %v118
    %v434 = vunpack.c.h.b16 %v118
    %v435 = vunpack.c.l.b16 %v119
    %v436 = vunpack.c.h.b16 %v119
    %v437 = vunpack.c.l.b16 %v120
    %v438 = vunpack.c.h.b16 %v120
    %v439 = vunpack.c.l.b16 %v121
    %v440 = vunpack.c.h.b16 %v121
    %v441 = vunpack.c.l.b16 %v122
    %v442 = vunpack.c.h.b16 %v122
    %v443 = vunpack.c.l.b16 %v123
    %v444 = vunpack.c.h.b16 %v123
    %v445 = vunpack.c.l.b16 %v124
    %v446 = vunpack.c.h.b16 %v124
    %v447 = vunpack.c.l.b16 %v125
    %v448 = vunpack.c.h.b16 %v125
    %v449 = vunpack.c.l.b16 %v126
    %v450 = vunpack.c.h.b16 %v126
    %v451 = vpack.c.b16 %v257, %v255
    %v452 = vpack.c.b16 %v258, %v256
    %v453 = vpack.c.b16 %v261, %v259
    %v454 = vpack.c.b16 %v262, %v260
    %v455 = vpack.c.b16 %v265, %v263
    %v456 = vpack.c.b16 %v266, %v264
    %v457 = vpack.c.b16 %v269, %v267
    %v458 = vpack.c.b16 %v270, %v268
    %v459 = vpack.c.b16 %v273, %v271
    %v460 = vpack.c.b16 %v274, %v272
    %v461 = vpack.c.b16 %v277, %v275
    %v462 = vpack.c.b16 %v278, %v276
    %v463 = vpack.c.b16 %v281, %v279
    %v464 = vpack.c.b16 %v282, %v280
    %v465 = vpack.c.b16 %v285, %v283
    %v466 = vpack.c.b16 %v286, %v284
    %v467 = vpack.c.b16 %v289, %v287
    %v468 = vpack.c.b16 %v290, %v288
    %v469 = vpack.c.b16 %v293, %v291
    %v470 = vpack.c.b16 %v294, %v292
    %v471 = vpack.c.b16 %v297, %v295
    %v472 = vpack.c.b16 %v298, %v296
    %v473 = vpack.c.b16 %v301, %v299
    %v474 = vpack.c.b16 %v302, %v300
    %v475 = vpack.c.b16 %v305, %v303
    %v476 = vpack.c.b16 %v306, %v304
    %v477 = vpack.c.b16 %v309, %v307
    %v478 = vpack.c.b16 %v310, %v308
    %v479 = vpack.c.b16 %v313, %v311
    %v480 = vpack.c.b16 %v314, %v312
    %v481 = vpack.c.b16 %v317, %v315
    %v482 = vpack.c.b16 %v318, %v316
    %v483 = vpack.c.b16 %v321, %v319
    %v484 = vpack.c.b16 %v322, %v320
    %v485 = vpack.c.b16 %v325, %v323
    %v486 = vpack.c.b16 %v326, %v324
    %v487 = vpack.c.b16 %v329, %v327
    %v488 = vpack.c.b16 %v330, %v328
    %v489 = vpack.c.b16 %v333, %v331
    %v490 = vpack.c.b16 %v334, %v332
    %v491 = vpack.c.b16 %v337, %v335
    %v492 = vpack.c.b16 %v338, %v336
    %v493 = vpack.c.b16 %v341, %v339
    %v494 = vpack.c.b16 %v342, %v340
    %v495 = vpack.c.b16 %v345, %v343
    %v496 = vpack.c.b16 %v346, %v344
    %v497 = vpack.c.b16 %v349, %v347
    %v498 = vpack.c.b16 %v350, %v348
    %v499 = vpack.c.b16 %v353, %v351
    %v500 = vpack.c.b16 %v354, %v352
    %v501 = vpack.c.b16 %v357, %v355
    %v502 = vpack.c.b16 %v358, %v356
    %v503 = vpack.c.b16 %v361, %v359
    %v504 = vpack.c.b16 %v362, %v360
    %v505 = vpack.c.b16 %v365, %v363
    %v506 = vpack.c.b16 %v366, %v364
    %v507 = vpack.c.b16 %v369, %v367
    %v508 = vpack.c.b16 %v370, %v368
    %v509 = vpack.c.b16 %v373, %v371
    %v510 = vpack.c.b16 %v374, %v372
    %v511 = vpack.c.b16 %v377, %v375
    %v512 = vpack.c.b16 %v378, %v376
    %v513 = vpack.c.b16 %v381, %v379
    %v514 = vpack.c.b16 %v382, %v380
    %v515 = vpack.c.b16 %v385, %v383
    %v516 = vpack.c.b16 %v386, %v384
    %v517 = vpack.c.b16 %v389, %v387
    %v518 = vpack.c.b16 %v390, %v388
    %v519 = vpack.c.b16 %v393, %v391
    %v520 = vpack.c.b16 %v394, %v392
    %v521 = vpack.c.b16 %v397, %v395
    %v522 = vpack.c.b16 %v398, %v396
    %v523 = vpack.c.b16 %v401, %v399
    %v524 = vpack.c.b16 %v402, %v400
    %v525 = vpack.c.b16 %v405, %v403
    %v526 = vpack.c.b16 %v406, %v404
    %v527 = vpack.c.b16 %v409, %v407
    %v528 = vpack.c.b16 %v410, %v408
    %v529 = vpack.c.b16 %v413, %v411
    %v530 = vpack.c.b16 %v414, %v412
    %v531 = vpack.c.b16 %v417, %v415
    %v532 = vpack.c.b16 %v418, %v416
    %v533 = vpack.c.b16 %v421, %v419
    %v534 = vpack.c.b16 %v422, %v420
    %v535 = vpack.c.b16 %v425, %v423
    %v536 = vpack.c.b16 %v426, %v424
    %v537 = vpack.c.b16 %v429, %v427
    %v538 = vpack.c.b16 %v430, %v428
    %v539 = vpack.c.b16 %v433, %v431
    %v540 = vpack.c.b16 %v434, %v432
    %v541 = vpack.c.b16 %v437, %v435
    %v542 = vpack.c.b16 %v438, %v436
    %v543 = vpack.c.b16 %v441, %v439
    %v544 = vpack.c.b16 %v442, %v440
    %v545 = vpack.c.b16 %v445, %v443
    %v546 = vpack.c.b16 %v446, %v444
    %v547 = vpack.c.b16 %v449, %v447
    %v548 = vpack.c.b16 %v450, %v448
    %vm647 = vcmask 130048
    %v649 = vsel %vm647, %v150, 0
    %651 = vmatpush.bf16.msra.mxu0 %v465
    %652 = vmatpush.bf16.msra.mxu0 %v463
    %653 = vmatpush.bf16.msra.mxu0 %v461
    %654 = vmatpush.bf16.msra.mxu0 %v459
    %655 = vmatpush.bf16.msra.mxu0 %v457
    %656 = vmatpush.bf16.msra.mxu0 %v455
    %657 = vmatpush.bf16.msra.mxu0 %v453
    %658 = vmatpush.bf16.msra.mxu0 %v451
    %659 = vmatmul.bf16.gmra.mxu0 %v144
    %v660 = vpop.f32.mrf.mxu0
    %v661 = vadd.f32 %v129, %v660
    %v662 = vpop.f32.mrf.mxu0
    %663 = vdwg.mxu0
    %664 = vmatpush.bf16.msra.mxu0 %v481
    %665 = vmatpush.bf16.msra.mxu0 %v479
    %666 = vmatpush.bf16.msra.mxu0 %v477
    %667 = vmatpush.bf16.msra.mxu0 %v475
    %668 = vmatpush.bf16.msra.mxu0 %v473
    %669 = vmatpush.bf16.msra.mxu0 %v471
    %670 = vmatpush.bf16.msra.mxu0 %v469
    %671 = vmatpush.bf16.msra.mxu0 %v467
    %672 = vmatmul.bf16.gmra.mxu0 %v145
    %v673 = vpop.f32.mrf.mxu0
    %v674 = vadd.f32 %v661, %v673
    %v675 = vpop.f32.mrf.mxu0
    %676 = vdwg.mxu0
    %677 = vmatpush.bf16.msra.mxu0 %v497
    %678 = vmatpush.bf16.msra.mxu0 %v495
    %679 = vmatpush.bf16.msra.mxu0 %v493
    %680 = vmatpush.bf16.msra.mxu0 %v491
    %681 = vmatpush.bf16.msra.mxu0 %v489
    %682 = vmatpush.bf16.msra.mxu0 %v487
    %683 = vmatpush.bf16.msra.mxu0 %v485
    %684 = vmatpush.bf16.msra.mxu0 %v483
    %685 = vmatmul.bf16.gmra.mxu0 %v146
    %v686 = vpop.f32.mrf.mxu0
    %v687 = vadd.f32 %v674, %v686
    %v688 = vpop.f32.mrf.mxu0
    %689 = vdwg.mxu0
    %690 = vmatpush.bf16.msra.mxu0 %v513
    %691 = vmatpush.bf16.msra.mxu0 %v511
    %692 = vmatpush.bf16.msra.mxu0 %v509
    %693 = vmatpush.bf16.msra.mxu0 %v507
    %694 = vmatpush.bf16.msra.mxu0 %v505
    %695 = vmatpush.bf16.msra.mxu0 %v503
    %696 = vmatpush.bf16.msra.mxu0 %v501
    %697 = vmatpush.bf16.msra.mxu0 %v499
    %698 = vmatmul.bf16.gmra.mxu0 %v147
    %v699 = vpop.f32.mrf.mxu0
    %v700 = vadd.f32 %v687, %v699
    %v701 = vpop.f32.mrf.mxu0
    %702 = vdwg.mxu0
    %703 = vmatpush.bf16.msra.mxu0 %v529
    %704 = vmatpush.bf16.msra.mxu0 %v527
    %705 = vmatpush.bf16.msra.mxu0 %v525
    %706 = vmatpush.bf16.msra.mxu0 %v523
    %707 = vmatpush.bf16.msra.mxu0 %v521
    %708 = vmatpush.bf16.msra.mxu0 %v519
    %709 = vmatpush.bf16.msra.mxu0 %v517
    %710 = vmatpush.bf16.msra.mxu0 %v515
    %711 = vmatmul.bf16.gmra.mxu0 %v148
    %v712 = vpop.f32.mrf.mxu0
    %v713 = vadd.f32 %v700, %v712
    %v714 = vpop.f32.mrf.mxu0
    %715 = vdwg.mxu0
    %716 = vmatpush.bf16.msra.mxu0 %v545
    %717 = vmatpush.bf16.msra.mxu0 %v543
    %718 = vmatpush.bf16.msra.mxu0 %v541
    %719 = vmatpush.bf16.msra.mxu0 %v539
    %720 = vmatpush.bf16.msra.mxu0 %v537
    %721 = vmatpush.bf16.msra.mxu0 %v535
    %722 = vmatpush.bf16.msra.mxu0 %v533
    %723 = vmatpush.bf16.msra.mxu0 %v531
    %724 = vmatmul.bf16.gmra.mxu0 %v149
    %v725 = vpop.f32.mrf.mxu0
    %v726 = vadd.f32 %v713, %v725
    %v727 = vpop.f32.mrf.mxu0
    %728 = vdwg.mxu0
    %729 = vmatpush.bf16.msra.mxu0 0
    %730 = vmatpush.bf16.msra.mxu0 0
    %731 = vmatpush.bf16.msra.mxu0 0
    %732 = vmatpush.bf16.msra.mxu0 0
    %733 = vmatpush.bf16.msra.mxu0 0
    %734 = vmatpush.bf16.msra.mxu0 0
    %735 = vmatpush.bf16.msra.mxu0 0
    %736 = vmatpush.bf16.msra.mxu0 %v547
    %737 = vmatmul.bf16.gmra.mxu0 %v649
    %v738 = vpop.f32.mrf.mxu0
    %v739 = vadd.f32 %v726, %v738
    %v740 = vpop.f32.mrf.mxu0
    %741 = vdwg.mxu0
    %742 = vmatpush.bf16.msra.mxu0 %v466
    %743 = vmatpush.bf16.msra.mxu0 %v464
    %744 = vmatpush.bf16.msra.mxu0 %v462
    %745 = vmatpush.bf16.msra.mxu0 %v460
    %746 = vmatpush.bf16.msra.mxu0 %v458
    %747 = vmatpush.bf16.msra.mxu0 %v456
    %748 = vmatpush.bf16.msra.mxu0 %v454
    %749 = vmatpush.bf16.msra.mxu0 %v452
    %750 = vmatmul.bf16.gmra.mxu0 %v144
    %v751 = vpop.f32.mrf.mxu0
    %v752 = vadd.f32 %v130, %v751
    %v753 = vpop.f32.mrf.mxu0
    %754 = vdwg.mxu0
    %755 = vmatpush.bf16.msra.mxu0 %v482
    %756 = vmatpush.bf16.msra.mxu0 %v480
    %757 = vmatpush.bf16.msra.mxu0 %v478
    %758 = vmatpush.bf16.msra.mxu0 %v476
    %759 = vmatpush.bf16.msra.mxu0 %v474
    %760 = vmatpush.bf16.msra.mxu0 %v472
    %761 = vmatpush.bf16.msra.mxu0 %v470
    %762 = vmatpush.bf16.msra.mxu0 %v468
    %763 = vmatmul.bf16.gmra.mxu0 %v145
    %v764 = vpop.f32.mrf.mxu0
    %v765 = vadd.f32 %v752, %v764
    %v766 = vpop.f32.mrf.mxu0
    %767 = vdwg.mxu0
    %768 = vmatpush.bf16.msra.mxu0 %v498
    %769 = vmatpush.bf16.msra.mxu0 %v496
    %770 = vmatpush.bf16.msra.mxu0 %v494
    %771 = vmatpush.bf16.msra.mxu0 %v492
    %772 = vmatpush.bf16.msra.mxu0 %v490
    %773 = vmatpush.bf16.msra.mxu0 %v488
    %774 = vmatpush.bf16.msra.mxu0 %v486
    %775 = vmatpush.bf16.msra.mxu0 %v484
    %776 = vmatmul.bf16.gmra.mxu0 %v146
    %v777 = vpop.f32.mrf.mxu0
    %v778 = vadd.f32 %v765, %v777
    %v779 = vpop.f32.mrf.mxu0
    %780 = vdwg.mxu0
    %781 = vmatpush.bf16.msra.mxu0 %v514
    %782 = vmatpush.bf16.msra.mxu0 %v512
    %783 = vmatpush.bf16.msra.mxu0 %v510
    %784 = vmatpush.bf16.msra.mxu0 %v508
    %785 = vmatpush.bf16.msra.mxu0 %v506
    %786 = vmatpush.bf16.msra.mxu0 %v504
    %787 = vmatpush.bf16.msra.mxu0 %v502
    %788 = vmatpush.bf16.msra.mxu0 %v500
    %789 = vmatmul.bf16.gmra.mxu0 %v147
    %v790 = vpop.f32.mrf.mxu0
    %v791 = vadd.f32 %v778, %v790
    %v792 = vpop.f32.mrf.mxu0
    %793 = vdwg.mxu0
    %794 = vmatpush.bf16.msra.mxu0 %v530
    %795 = vmatpush.bf16.msra.mxu0 %v528
    %796 = vmatpush.bf16.msra.mxu0 %v526
    %797 = vmatpush.bf16.msra.mxu0 %v524
    %798 = vmatpush.bf16.msra.mxu0 %v522
    %799 = vmatpush.bf16.msra.mxu0 %v520
    %800 = vmatpush.bf16.msra.mxu0 %v518
    %801 = vmatpush.bf16.msra.mxu0 %v516
    %802 = vmatmul.bf16.gmra.mxu0 %v148
    %v803 = vpop.f32.mrf.mxu0
    %v804 = vadd.f32 %v791, %v803
    %v805 = vpop.f32.mrf.mxu0
    %806 = vdwg.mxu0
    %807 = vmatpush.bf16.msra.mxu0 %v546
    %808 = vmatpush.bf16.msra.mxu0 %v544
    %809 = vmatpush.bf16.msra.mxu0 %v542
    %810 = vmatpush.bf16.msra.mxu0 %v540
    %811 = vmatpush.bf16.msra.mxu0 %v538
    %812 = vmatpush.bf16.msra.mxu0 %v536
    %813 = vmatpush.bf16.msra.mxu0 %v534
    %814 = vmatpush.bf16.msra.mxu0 %v532
    %815 = vmatmul.bf16.gmra.mxu0 %v149
    %v816 = vpop.f32.mrf.mxu0
    %v817 = vadd.f32 %v804, %v816
    %v818 = vpop.f32.mrf.mxu0
    %819 = vdwg.mxu0
    %820 = vmatpush.bf16.msra.mxu0 0
    %821 = vmatpush.bf16.msra.mxu0 0
    %822 = vmatpush.bf16.msra.mxu0 0
    %823 = vmatpush.bf16.msra.mxu0 0
    %824 = vmatpush.bf16.msra.mxu0 0
    %825 = vmatpush.bf16.msra.mxu0 0
    %826 = vmatpush.bf16.msra.mxu0 0
    %827 = vmatpush.bf16.msra.mxu0 %v548
    %828 = vmatmul.bf16.gmra.mxu0 %v649
    %v829 = vpop.f32.mrf.mxu0
    %v830 = vadd.f32 %v817, %v829
    %v831 = vpop.f32.mrf.mxu0
    %832 = vdwg.mxu0
    %v833 = vmax.f32 %v739, 0.0
    %v834 = vmax.f32 %v830, 0.0
    %v835 = vld [vmem:[%s3] sm:$0xff]
    %v836 = vld [vmem:[%s3 + $0x8] sm:$0xff]
    %v837 = vld [vmem:[%s3 + $0x10] sm:$0xff]
    %v838 = vld [vmem:[%s3 + $0x18] sm:$0xff]
    %v839 = vld [vmem:[%s3 + $0x20] sm:$0xff]
    %v840 = vld [vmem:[%s3 + $0x28] sm:$0xff]
    %v841 = vld [vmem:[%s3 + $0x30] sm:$0xff]
    %v842 = vld [vmem:[%s3 + $0x38] sm:$0xff]
    %v843 = vld [vmem:[%s3 + $0x40] sm:$0xff]
    %v844 = vld [vmem:[%s3 + $0x48] sm:$0xff]
    %v845 = vld [vmem:[%s3 + $0x50] sm:$0xff]
    %v846 = vld [vmem:[%s3 + $0x58] sm:$0xff]
    %v847 = vld [vmem:[%s3 + $0x60] sm:$0xff]
    %v848 = vld [vmem:[%s3 + $0x68] sm:$0xff]
    %v849 = vld [vmem:[%s3 + $0x70] sm:$0xff]
    %v850 = vld [vmem:[%s3 + $0x78] sm:$0xff]
    %v851 = vld [vmem:[%s3 + $0x80] sm:$0xff]
    %v852 = vld [vmem:[%s3 + $0x88] sm:$0xff]
    %v853 = vld [vmem:[%s3 + $0x90] sm:$0xff]
    %v854 = vld [vmem:[%s3 + $0x98] sm:$0xff]
    %v855 = vld [vmem:[%s3 + $0xa0] sm:$0xff]
    %v856 = vld [vmem:[%s3 + $0xa8] sm:$0xff]
    %v857 = vld [vmem:[%s3 + $0xb0] sm:$0xff]
    %v858 = vld [vmem:[%s3 + $0xb8] sm:$0xff]
    %v859 = vld [vmem:[%s3 + $0xc0] sm:$0xff]
    %v860 = vld [vmem:[%s3 + $0xc8] sm:$0xff]
    %v861 = vld [vmem:[%s3 + $0xd0] sm:$0xff]
    %v862 = vld [vmem:[%s3 + $0xd8] sm:$0xff]
    %v863 = vld [vmem:[%s3 + $0xe0] sm:$0xff]
    %v864 = vld [vmem:[%s3 + $0xe8] sm:$0xff]
    %v865 = vld [vmem:[%s3 + $0xf0] sm:$0xff]
    %v866 = vld [vmem:[%s3 + $0xf8] sm:$0xff]
    %867 = vmatpush.msra.mxu0 %v850
    %868 = vmatpush.msra.mxu0 %v849
    %869 = vmatpush.msra.mxu0 %v848
    %870 = vmatpush.msra.mxu0 %v847
    %871 = vmatpush.msra.mxu0 %v846
    %872 = vmatpush.msra.mxu0 %v845
    %873 = vmatpush.msra.mxu0 %v844
    %874 = vmatpush.msra.mxu0 %v843
    %875 = vmatpush.msra.mxu0 %v842
    %876 = vmatpush.msra.mxu0 %v841
    %877 = vmatpush.msra.mxu0 %v840
    %878 = vmatpush.msra.mxu0 %v839
    %879 = vmatpush.msra.mxu0 %v838
    %880 = vmatpush.msra.mxu0 %v837
    %881 = vmatpush.msra.mxu0 %v836
    %882 = vmatpush.msra.mxu0 %v835
    %883 = vmatmul.f32.gmra.mxu0 %v833
    %v884 = vpop.f32.mrf.mxu0
    %v885 = vadd.f32 0.0, %v884
    %886 = vdwg.mxu0
    %887 = vmatpush.msra.mxu0 %v866
    %888 = vmatpush.msra.mxu0 %v865
    %889 = vmatpush.msra.mxu0 %v864
    %890 = vmatpush.msra.mxu0 %v863
    %891 = vmatpush.msra.mxu0 %v862
    %892 = vmatpush.msra.mxu0 %v861
    %893 = vmatpush.msra.mxu0 %v860
    %894 = vmatpush.msra.mxu0 %v859
    %895 = vmatpush.msra.mxu0 %v858
    %896 = vmatpush.msra.mxu0 %v857
    %897 = vmatpush.msra.mxu0 %v856
    %898 = vmatpush.msra.mxu0 %v855
    %899 = vmatpush.msra.mxu0 %v854
    %900 = vmatpush.msra.mxu0 %v853
    %901 = vmatpush.msra.mxu0 %v852
    %902 = vmatpush.msra.mxu0 %v851
    %903 = vmatmul.f32.gmra.mxu0 %v834
    %v904 = vpop.f32.mrf.mxu0
    %v905 = vadd.f32 %v885, %v904
    %906 = vdwg.mxu0
    %v907 = vld [vmem:[%s4] sm:$0x1]
    %v908 = vld [vmem:[%s5] sm:$0xff]
    %910 = vset.pattern.permute.xlu0 0
    %911 = vperm.xlu0 %910, %v908
    %v912 = vpop.permute.xlu0 %911
    %v914 = vmul.f32 %v912, %v905
    %v916 = vperm.slane %v907, 0
    %v918 = vadd.f32 %v914, %v916
    %vm919 = vcmask 80896
    %v920 = vsel %vm919, %v918, -inf
    %921 = vmax.xlane.f32.xlu0 %v920
    %v922 = vpop.xlane.xlu0 %921
    %v923 = vsub.f32 %v918, %v922
    %v924 = vmul.f32 %v923, 1.442695
    %v925 = vpow.pop %v924
    %v926 = vsel %vm919, %v925, 0.0
    %927 = vadd.xlane.f32.xlu0 %v926
    %v928 = vpop.xlane.xlu0 %927
    %v929 = vlog2.pop %v928
    %v930 = vmul.f32 %v929, 0.6931472
    %v931 = vsub.f32 %v923, %v930
    %v932 = vadd.f32 %v931, 0.0
    %933 = vst.msk [vmem:[#allocation2] sm:$0xff] %vm919, %v932
    // Predicated region
    $region26: #{mc_dropout_predict.1} parent=1 // pred_check
      _
    $region27: #{mc_dropout_predict.1} parent=1 // pred_check_branch
      %935 = sbr.rel (0) target = $region29
    $region28: #{mc_dropout_predict.1} parent=1 // pred_region
      %937 = vsyncadd [#allocation3], 0
      %s939 = sshll.u32 [#allocation2], 4
      %s940 = int_to_ptr.vmem [resolvable:$true] %s939
      %s941 = sshll.u32 %s6, 4
      %s942 = int_to_ptr.hbm [resolvable:$true] %s941
      %944 = dma.vmem_to_hbm [thread:$0]  %s940, 128, %s942, [#allocation3]
    $region29: #{mc_dropout_predict.1} parent=1 // pred_fallthru
      _
    // Predicated region
    $region30: #{mc_dropout_predict.1} parent=1 // pred_check
      _
    $region31: #{mc_dropout_predict.1} parent=1 // pred_check_branch
      %946 = sbr.rel (0) target = $region33
    $region32: #{mc_dropout_predict.1} parent=1 // pred_region
      %948 = dma.done [#allocation3], 128
    $region33: #{mc_dropout_predict.1} parent=1 // pred_fallthru
      _
    %949 = vsyncpa [#allocation3], 1

</llo_original>
